<compile_context>
chip_gen: v5e
topology: v5e:2x2
jax: 0.10.0
libtpu: 0.0.40
codegen_flags: <defaults>
</compile_context>

<pallas_src>
import functools

import jax
import jax.numpy as jnp
from jax.experimental import pallas as pl
from jax.experimental.pallas import tpu as pltpu


def ffn_kernel(x_ref, w1_ref, b1_ref, w2_ref, b2_ref, gamma_ref, beta_ref, o_ref,
               *, eps):
    # x_ref: (TM, C) bf16 tile of tokens; w1_ref: (C, H1) bf16; w2_ref: (H1, C) bf16.

    # fc1: Linear(C -> H1) + ReLU.  bf16 MXU matmul, f32 accumulate, f32 epilogue.
    h = jnp.dot(x_ref[...], w1_ref[...], preferred_element_type=jnp.float32)
    h = jnp.maximum(h + b1_ref[...].astype(jnp.float32), 0.0)

    # fc2: Linear(H1 -> C).  bf16 operands, f32 accumulate.
    y = jnp.dot(h.astype(jnp.bfloat16), w2_ref[...], preferred_element_type=jnp.float32)
    y = y + b2_ref[...].astype(jnp.float32)

    # Residual add in f32.  Re-read the (still VMEM-resident) x tile here instead of
    # keeping an f32 copy live across both matmuls.
    z = y + x_ref[...].astype(jnp.float32)

    # LayerNorm over last dim (biased variance, affine) — stable two-pass form in f32.
    mean = jnp.mean(z, axis=-1, keepdims=True)
    zc = z - mean
    var = jnp.mean(zc * zc, axis=-1, keepdims=True)
    zn = zc * jax.lax.rsqrt(var + eps)
    o_ref[...] = (zn * gamma_ref[...].astype(jnp.float32)
                  + beta_ref[...].astype(jnp.float32)).astype(o_ref.dtype)


def _round_up(x, m):
    return (x + m - 1) // m * m


def _choose_tm(M, requested):
    """Token-tile rows: multiple of 16 (bf16 sublane packing), >=256 when possible
    (full MXU pass, amortize per-step overhead), never far beyond M, and keep at
    least 2 grid steps when M allows so both v7x TensorCores get work."""
    if M <= 256:
        return _round_up(M, 16)
    tm = max(256, _round_up(min(requested, M), 256))
    half = max(256, _round_up(pl.cdiv(M, 2), 256))   # grid_m >= 2 (v7x megacore)
    return min(tm, half)


def feed_forward(x, w1, b1, w2, b2, gamma, beta, *, eps=1e-5, tm=512):
    """x: (B, T, C); w1: (C, H1); w2: (H1, C); returns (B, T, C) in bf16.

    Callers should pass x / w1 / w2 already in bf16 (one-time cast outside the call
    path); the astype below is then a no-op.  Biases / LN params stay f32.
    """
    B, T, C = x.shape
    H1 = w1.shape[1]
    M = B * T

    io_dtype = jnp.bfloat16
    x2d = x.reshape(M, C).astype(io_dtype)
    w1 = w1.astype(jnp.bfloat16)
    w2 = w2.astype(jnp.bfloat16)

    tm = _choose_tm(M, tm)
    grid_m = pl.cdiv(M, tm)          # partial last block is masked by Pallas

    # VMEM budget from the actual part (128 MiB v5e/v6e, 64 MiB v7x) minus headroom.
    try:
        vmem_cap = int(pltpu.get_tpu_info().vmem_capacity_bytes)
    except Exception:  # pragma: no cover - conservative fallback
        vmem_cap = 64 * 1024 * 1024
    bytes_tiles = 2 * 2 * tm * C * 2                      # x + out, double-buffered bf16
    bytes_weights = 2 * (C * H1 + H1 * C) + (H1 + 3 * C) * 4   # bf16 W's + f32 vecs
    bytes_inter = tm * H1 * (4 + 2) + 4 * tm * C * 4      # fc1 act (f32 + bf16), LN temps
    needed = bytes_tiles + bytes_weights + bytes_inter
    budget = min(vmem_cap - (16 << 20), max(2 * needed, 32 << 20))
    vmem_bytes = int(min(vmem_cap, max(budget, needed + (2 << 20))))

    # Advisory cost so XLA schedules/overlaps the custom call sensibly.
    cost = pl.CostEstimate(
        flops=4 * M * C * H1 + 10 * M * C,
        transcendentals=M,
        bytes_accessed=2 * M * C * 2 + 2 * (C * H1 + H1 * C) + (H1 + 3 * C) * 4,
    )

    single = pl.Buffered(1)  # grid-invariant operands: no double buffering needed
    kernel = functools.partial(ffn_kernel, eps=eps)
    out2d = pl.pallas_call(
        kernel,
        out_shape=jax.ShapeDtypeStruct((M, C), io_dtype),
        grid_spec=pltpu.PrefetchScalarGridSpec(
            num_scalar_prefetch=0,
            grid=(grid_m,),
            in_specs=[
                pl.BlockSpec((tm, C), lambda i: (i, 0)),                          # x tile
                pl.BlockSpec((C, H1), lambda i: (0, 0), pipeline_mode=single),    # W1
                pl.BlockSpec((1, H1), lambda i: (0, 0), pipeline_mode=single),    # b1
                pl.BlockSpec((H1, C), lambda i: (0, 0), pipeline_mode=single),    # W2
                pl.BlockSpec((1, C), lambda i: (0, 0), pipeline_mode=single),     # b2
                pl.BlockSpec((1, C), lambda i: (0, 0), pipeline_mode=single),     # gamma
                pl.BlockSpec((1, C), lambda i: (0, 0), pipeline_mode=single),     # beta
            ],
            out_specs=pl.BlockSpec((tm, C), lambda i: (i, 0)),
        ),
        compiler_params=pltpu.CompilerParams(
            dimension_semantics=("parallel",),
            vmem_limit_bytes=vmem_bytes),
        cost_estimate=cost,
    )(x2d, w1, b1, w2, b2, gamma, beta)

    return out2d.reshape(B, T, C)


def reference(x, w1, b1, w2, b2, gamma, beta, eps=1e-5):
    h = jnp.maximum(x @ w1 + b1[0], 0.0)
    y = h @ w2 + b2[0]
    z = y + x
    mean = jnp.mean(z, axis=-1, keepdims=True)
    var = jnp.mean((z - mean) ** 2, axis=-1, keepdims=True)
    return (z - mean) * jax.lax.rsqrt(var + eps) * gamma[0] + beta[0]


if __name__ == "__main__":
    # Residual add requires hiddens[1] == hidden_size (as in the PyTorch module's usage).
    hidden_size = 128          # C
    hiddens = [256, 128]       # [H1, H2] with H2 == hidden_size
    B, T = 2, 8

    key = jax.random.PRNGKey(0)
    k0, k1, k2, k3, k4 = jax.random.split(key, 5)

    x = jax.random.normal(k0, (B, T, hidden_size), dtype=jnp.float32)

    # Deterministic parameter init (Kaiming-ish scale), stored as (in, out).
    w1 = jax.random.normal(k1, (hidden_size, hiddens[0]), jnp.float32) * (1.0 / hidden_size ** 0.5)
    b1 = jax.random.normal(k2, (1, hiddens[0]), jnp.float32) * 0.01
    w2 = jax.random.normal(k3, (hiddens[0], hiddens[1]), jnp.float32) * (1.0 / hiddens[0] ** 0.5)
    b2 = jax.random.normal(k4, (1, hiddens[1]), jnp.float32) * 0.01
    gamma = jnp.ones((1, hidden_size), jnp.float32)
    beta = jnp.zeros((1, hidden_size), jnp.float32)

    # One-time bf16 casts OUTSIDE the per-call path (weights + streamed activations).
    x_bf = x.astype(jnp.bfloat16)
    w1_bf = w1.astype(jnp.bfloat16)
    w2_bf = w2.astype(jnp.bfloat16)

    out = feed_forward(x_bf, w1_bf, b1, w2_bf, b2, gamma, beta)
    out = jax.block_until_ready(out)

    ref = reference(x, w1, b1, w2, b2, gamma, beta)
    assert out.shape == (B, T, hidden_size)
    # bf16 I/O + bf16 MXU operands with f32 accumulation: match to a few 1e-2.
    assert jnp.allclose(out.astype(jnp.float32), ref, atol=5e-2, rtol=5e-2), \
        "mismatch vs reference"
    print("KERNEL_OK")
</pallas_src>

<mosaic_0001>
module attributes {stable_mosaic.version = 11 : i64} {
  func.func @ffn_kernel(%arg0: i32, %arg1: memref<16x128xbf16, #tpu.memory_space<vmem>>, %arg2: memref<128x256xbf16, #tpu.memory_space<vmem>>, %arg3: memref<1x256xf32, #tpu.memory_space<vmem>>, %arg4: memref<256x128xbf16, #tpu.memory_space<vmem>>, %arg5: memref<1x128xf32, #tpu.memory_space<vmem>>, %arg6: memref<1x128xf32, #tpu.memory_space<vmem>>, %arg7: memref<1x128xf32, #tpu.memory_space<vmem>>, %arg8: memref<16x128xbf16, #tpu.memory_space<vmem>>) attributes {dimension_semantics = [#tpu.dimension_semantics<parallel>], iteration_bounds = array<i64: 1>, scalar_prefetch = 0 : i64, scratch_operands = 0 : i64, tpu.core_type = #tpu.core_type<tc>, window_params = [{transform_indices = @transform_0, window_bounds = array<i64: 16, 128>}, {pipeline_mode = #tpu.pipeline_mode<synchronous>, transform_indices = @transform_1, window_bounds = array<i64: 128, 256>}, {pipeline_mode = #tpu.pipeline_mode<synchronous>, transform_indices = @transform_2, window_bounds = array<i64: 1, 256>}, {pipeline_mode = #tpu.pipeline_mode<synchronous>, transform_indices = @transform_3, window_bounds = array<i64: 256, 128>}, {pipeline_mode = #tpu.pipeline_mode<synchronous>, transform_indices = @transform_4, window_bounds = array<i64: 1, 128>}, {pipeline_mode = #tpu.pipeline_mode<synchronous>, transform_indices = @transform_5, window_bounds = array<i64: 1, 128>}, {pipeline_mode = #tpu.pipeline_mode<synchronous>, transform_indices = @transform_6, window_bounds = array<i64: 1, 128>}, {transform_indices = @transform_7, window_bounds = array<i64: 16, 128>}]} {
    %c0 = arith.constant 0 : index
    %c0_0 = arith.constant 0 : index
    %0 = vector.load %arg1[%c0, %c0_0] : memref<16x128xbf16, #tpu.memory_space<vmem>>, vector<16x128xbf16>
    %c0_1 = arith.constant 0 : index
    %c0_2 = arith.constant 0 : index
    %1 = vector.load %arg2[%c0_1, %c0_2] : memref<128x256xbf16, #tpu.memory_space<vmem>>, vector<128x256xbf16>
    %cst = arith.constant dense<0.000000e+00> : vector<16x256xf32>
    %2 = tpu.matmul %0, %1, %cst {dimension_numbers = #tpu.dot_dimension_numbers<[1], [0], [0], [1], [0, 0, 1, 1], [], []>} : vector<16x128xbf16>, vector<128x256xbf16>, vector<16x256xf32> -> vector<16x256xf32>
    %c0_3 = arith.constant 0 : index
    %c0_4 = arith.constant 0 : index
    %3 = vector.load %arg3[%c0_3, %c0_4] : memref<1x256xf32, #tpu.memory_space<vmem>>, vector<1x256xf32>
    %4 = vector.broadcast %3 : vector<1x256xf32> to vector<16x256xf32>
    %5 = arith.addf %2, %4 : vector<16x256xf32>
    %cst_5 = arith.constant 0.000000e+00 : f32
    %6 = vector.broadcast %cst_5 : f32 to vector<16x256xf32>
    %7 = arith.maximumf %5, %6 : vector<16x256xf32>
    %8 = arith.truncf %7 : vector<16x256xf32> to vector<16x256xbf16>
    %c0_6 = arith.constant 0 : index
    %c0_7 = arith.constant 0 : index
    %9 = vector.load %arg4[%c0_6, %c0_7] : memref<256x128xbf16, #tpu.memory_space<vmem>>, vector<256x128xbf16>
    %cst_8 = arith.constant dense<0.000000e+00> : vector<16x128xf32>
    %10 = tpu.matmul %8, %9, %cst_8 {dimension_numbers = #tpu.dot_dimension_numbers<[1], [0], [0], [1], [0, 0, 1, 1], [], []>} : vector<16x256xbf16>, vector<256x128xbf16>, vector<16x128xf32> -> vector<16x128xf32>
    %c0_9 = arith.constant 0 : index
    %c0_10 = arith.constant 0 : index
    %11 = vector.load %arg5[%c0_9, %c0_10] : memref<1x128xf32, #tpu.memory_space<vmem>>, vector<1x128xf32>
    %12 = vector.broadcast %11 : vector<1x128xf32> to vector<16x128xf32>
    %13 = arith.addf %10, %12 : vector<16x128xf32>
    %c0_11 = arith.constant 0 : index
    %c0_12 = arith.constant 0 : index
    %14 = vector.load %arg1[%c0_11, %c0_12] : memref<16x128xbf16, #tpu.memory_space<vmem>>, vector<16x128xbf16>
    %15 = arith.extf %14 : vector<16x128xbf16> to vector<16x128xf32>
    %16 = arith.addf %13, %15 : vector<16x128xf32>
    %cst_13 = arith.constant dense<0.000000e+00> : vector<16xf32>
    %17 = vector.multi_reduction <add>, %16, %cst_13 [1] : vector<16x128xf32> to vector<16xf32>
    %18 = vector.shape_cast %17 : vector<16xf32> to vector<16x1xf32>
    %cst_14 = arith.constant 1.280000e+02 : f32
    %19 = vector.broadcast %cst_14 : f32 to vector<16x1xf32>
    %20 = arith.divf %18, %19 : vector<16x1xf32>
    %21 = vector.broadcast %20 : vector<16x1xf32> to vector<16x128xf32>
    %22 = arith.subf %16, %21 : vector<16x128xf32>
    %23 = arith.mulf %22, %22 : vector<16x128xf32>
    %cst_15 = arith.constant dense<0.000000e+00> : vector<16xf32>
    %24 = vector.multi_reduction <add>, %23, %cst_15 [1] : vector<16x128xf32> to vector<16xf32>
    %25 = vector.shape_cast %24 : vector<16xf32> to vector<16x1xf32>
    %cst_16 = arith.constant 1.280000e+02 : f32
    %26 = vector.broadcast %cst_16 : f32 to vector<16x1xf32>
    %27 = arith.divf %25, %26 : vector<16x1xf32>
    %cst_17 = arith.constant 9.99999974E-6 : f32
    %28 = vector.broadcast %cst_17 : f32 to vector<16x1xf32>
    %29 = arith.addf %27, %28 : vector<16x1xf32>
    %30 = math.rsqrt %29 : vector<16x1xf32>
    %31 = vector.broadcast %30 : vector<16x1xf32> to vector<16x128xf32>
    %32 = arith.mulf %22, %31 : vector<16x128xf32>
    %c0_18 = arith.constant 0 : index
    %c0_19 = arith.constant 0 : index
    %33 = vector.load %arg6[%c0_18, %c0_19] : memref<1x128xf32, #tpu.memory_space<vmem>>, vector<1x128xf32>
    %34 = vector.broadcast %33 : vector<1x128xf32> to vector<16x128xf32>
    %35 = arith.mulf %32, %34 : vector<16x128xf32>
    %c0_20 = arith.constant 0 : index
    %c0_21 = arith.constant 0 : index
    %36 = vector.load %arg7[%c0_20, %c0_21] : memref<1x128xf32, #tpu.memory_space<vmem>>, vector<1x128xf32>
    %37 = vector.broadcast %36 : vector<1x128xf32> to vector<16x128xf32>
    %38 = arith.addf %35, %37 : vector<16x128xf32>
    %39 = arith.truncf %38 : vector<16x128xf32> to vector<16x128xbf16>
    %c0_22 = arith.constant 0 : index
    %c0_23 = arith.constant 0 : index
    %40 = vector.load %arg8[%c0_22, %c0_23] : memref<16x128xbf16, #tpu.memory_space<vmem>>, vector<16x128xbf16>
    tpu.vector_store %arg8[%c0_22, %c0_23], %39 {strides = array<i32>} : memref<16x128xbf16, #tpu.memory_space<vmem>>, vector<16x128xbf16>,
    return
  }
  func.func @transform_0(%arg0: i32) -> (i32, i32) {
    %c0_i32 = arith.constant 0 : i32
    %c0_i32_0 = arith.constant 0 : i32
    return %arg0, %c0_i32 : i32, i32
  }
  func.func @transform_1(%arg0: i32) -> (i32, i32) {
    %c0_i32 = arith.constant 0 : i32
    %c0_i32_0 = arith.constant 0 : i32
    %c0_i32_1 = arith.constant 0 : i32
    return %c0_i32, %c0_i32_0 : i32, i32
  }
  func.func @transform_2(%arg0: i32) -> (i32, i32) {
    %c0_i32 = arith.constant 0 : i32
    %c0_i32_0 = arith.constant 0 : i32
    %c0_i32_1 = arith.constant 0 : i32
    return %c0_i32, %c0_i32_0 : i32, i32
  }
  func.func @transform_3(%arg0: i32) -> (i32, i32) {
    %c0_i32 = arith.constant 0 : i32
    %c0_i32_0 = arith.constant 0 : i32
    %c0_i32_1 = arith.constant 0 : i32
    return %c0_i32, %c0_i32_0 : i32, i32
  }
  func.func @transform_4(%arg0: i32) -> (i32, i32) {
    %c0_i32 = arith.constant 0 : i32
    %c0_i32_0 = arith.constant 0 : i32
    %c0_i32_1 = arith.constant 0 : i32
    return %c0_i32, %c0_i32_0 : i32, i32
  }
  func.func @transform_5(%arg0: i32) -> (i32, i32) {
    %c0_i32 = arith.constant 0 : i32
    %c0_i32_0 = arith.constant 0 : i32
    %c0_i32_1 = arith.constant 0 : i32
    return %c0_i32, %c0_i32_0 : i32, i32
  }
  func.func @transform_6(%arg0: i32) -> (i32, i32) {
    %c0_i32 = arith.constant 0 : i32
    %c0_i32_0 = arith.constant 0 : i32
    %c0_i32_1 = arith.constant 0 : i32
    return %c0_i32, %c0_i32_0 : i32, i32
  }
  func.func @transform_7(%arg0: i32) -> (i32, i32) {
    %c0_i32 = arith.constant 0 : i32
    %c0_i32_0 = arith.constant 0 : i32
    return %arg0, %c0_i32 : i32, i32
  }
}

</mosaic_0001>

<llo_original>
// kernel: tpu_custom_call.1
$region0: #{tpu_custom_call.1}
  #allocation0 [shape = 'u32[]', space=smem, size = 0x4, offset = 0x4, fixed_abs, tag = 'smem constant byte address 0x4 - core index']
  #allocation1 [shape = 'u32[72,128]{1,0:T(1,128)}', space=vmem, size = 0x9000, scoped, tag = 'internal scratch']
  %s0 = inlined_call_operand.hbm [shape: bf16[16,128], index: 0, kind: input, shape index: {}]
  %s1 = inlined_call_operand.hbm [shape: bf16[128,256], index: 1, kind: input, shape index: {}]
  %s2 = inlined_call_operand.hbm [shape: f32[1,256], index: 2, kind: input, shape index: {}]
  %s3 = inlined_call_operand.hbm [shape: bf16[256,128], index: 3, kind: input, shape index: {}]
  %s4 = inlined_call_operand.vmem [shape: f32[1,128], index: 4, kind: input, shape index: {}]
  %s5 = inlined_call_operand.vmem [shape: f32[1,128], index: 5, kind: input, shape index: {}]
  %s6 = inlined_call_operand.vmem [shape: f32[1,128], index: 6, kind: input, shape index: {}]
  %s7 = inlined_call_operand.hbm [shape: bf16[16,128], index: 7, kind: output, shape index: {}]
  %s8 = sld [smem:[#allocation0]]
  $region54: #{tpu_custom_call.1} parent=0
    _
  %s10 = ssub.s32 1, %s8
  %s11 = scalar_select 0, %s10, %s8
  $region1: #{tpu_custom_call.1} parent=0
    #allocation2 [shape = 'u8[4096]{0}', space=vmem, size = 0x1000, scoped, tag = 'input window, operand 0, single buffered']
    #allocation3 [shape = 's32[1]{0}', space=sflag, size = 0x4, scoped, tag = 'scoped memory for tpu_custom_call.1']
    #allocation4 [shape = 's32[1]{0}', space=sflag, size = 0x4, scoped, tag = 'scoped memory for tpu_custom_call.1']
    #allocation5 [shape = 'u8[65536]{0}', space=vmem, size = 0x10000, scoped, tag = 'input window, operand 1, single buffered']
    #allocation6 [shape = 's32[1]{0}', space=sflag, size = 0x4, scoped, tag = 'scoped memory for tpu_custom_call.1']
    #allocation7 [shape = 'u8[1024]{0}', space=vmem, size = 0x400, scoped, tag = 'input window, operand 2, single buffered']
    #allocation8 [shape = 'u8[65536]{0}', space=vmem, size = 0x10000, scoped, tag = 'input window, operand 3, single buffered']
    #allocation9 [shape = 's32[1]{0}', space=sflag, size = 0x4, scoped, tag = 'scoped memory for tpu_custom_call.1']
    #allocation10 [shape = 'u8[4096]{0}', space=vmem, size = 0x1000, scoped, tag = 'output window, operand 0, single buffered']
    %12 = vsyncpa [#allocation3], 0
    %13 = vsyncpa [#allocation6], 0
    %14 = vsyncpa [#allocation9], 0
    %15 = vsyncpa [#allocation4], 0
    // Predicated region
    $region2: #{tpu_custom_call.1} parent=1 // pred_check
      _
    $region3: #{tpu_custom_call.1} parent=1 // pred_check_branch
      %17 = sbr.rel (0) target = $region5
    $region4: #{tpu_custom_call.1} parent=1 // pred_region
      %19 = vsyncadd [#allocation3], 0
      %s20 = sshll.u32 %s0, 4
      %s21 = int_to_ptr.hbm [resolvable:$true] %s20
      %s22 = sshll.u32 [#allocation2], 4
      %s23 = int_to_ptr.vmem [resolvable:$true] %s22
      %28 = dma.hbm_to_vmem [thread:$0]  %s21, 128, %s23, [#allocation3], 64, 64, 4
    $region5: #{tpu_custom_call.1} parent=1 // pred_fallthru
      _
    // Predicated region
    $region6: #{tpu_custom_call.1} parent=1 // pred_check
      _
    $region7: #{tpu_custom_call.1} parent=1 // pred_check_branch
      %30 = sbr.rel (0) target = $region9
    $region8: #{tpu_custom_call.1} parent=1 // pred_region
      %32 = vsyncadd [#allocation6], 0
      %s33 = sshll.u32 %s1, 4
      %s34 = int_to_ptr.hbm [resolvable:$true] %s33
      %s35 = sshll.u32 [#allocation5], 4
      %s36 = int_to_ptr.vmem [resolvable:$true] %s35
      %41 = dma.hbm_to_vmem [thread:$0]  %s34, 2048, %s36, [#allocation6], 128, 128, 8
    $region9: #{tpu_custom_call.1} parent=1 // pred_fallthru
      _
    // Predicated region
    $region10: #{tpu_custom_call.1} parent=1 // pred_check
      _
    $region11: #{tpu_custom_call.1} parent=1 // pred_check_branch
      %43 = sbr.rel (0) target = $region13
    $region12: #{tpu_custom_call.1} parent=1 // pred_region
      %45 = vsyncadd [#allocation6], 0
      %s47 = sshll.u32 %s2, 4
      %s48 = int_to_ptr.hbm [resolvable:$true] %s47
      %s49 = sshll.u32 [#allocation7], 4
      %s50 = int_to_ptr.vmem [resolvable:$true] %s49
      %52 = dma.hbm_to_vmem [thread:$0]  %s48, 32, %s50, [#allocation6]
    $region13: #{tpu_custom_call.1} parent=1 // pred_fallthru
      _
    // Predicated region
    $region14: #{tpu_custom_call.1} parent=1 // pred_check
      _
    $region15: #{tpu_custom_call.1} parent=1 // pred_check_branch
      %54 = sbr.rel (0) target = $region17
    $region16: #{tpu_custom_call.1} parent=1 // pred_region
      %56 = vsyncadd [#allocation9], 0
      %s57 = sshll.u32 %s3, 4
      %s58 = int_to_ptr.hbm [resolvable:$true] %s57
      %s59 = sshll.u32 [#allocation8], 4
      %s60 = int_to_ptr.vmem [resolvable:$true] %s59
      %65 = dma.hbm_to_vmem [thread:$0]  %s58, 2048, %s60, [#allocation9], 64, 64, 4
    $region17: #{tpu_custom_call.1} parent=1 // pred_fallthru
      _
    // Predicated region
    $region18: #{tpu_custom_call.1} parent=1 // pred_check
      _
    $region19: #{tpu_custom_call.1} parent=1 // pred_check_branch
      %67 = sbr.rel (0) target = $region21
    $region20: #{tpu_custom_call.1} parent=1 // pred_region
      _
    $region21: #{tpu_custom_call.1} parent=1 // pred_fallthru
      _
    // Predicated region
    $region22: #{tpu_custom_call.1} parent=1 // pred_check
      _
    $region23: #{tpu_custom_call.1} parent=1 // pred_check_branch
      %69 = sbr.rel (0) target = $region25
    $region24: #{tpu_custom_call.1} parent=1 // pred_region
      _
    $region25: #{tpu_custom_call.1} parent=1 // pred_fallthru
      _
    // Predicated region
    $region26: #{tpu_custom_call.1} parent=1 // pred_check
      _
    $region27: #{tpu_custom_call.1} parent=1 // pred_check_branch
      %71 = sbr.rel (0) target = $region29
    $region28: #{tpu_custom_call.1} parent=1 // pred_region
      _
    $region29: #{tpu_custom_call.1} parent=1 // pred_fallthru
      _
    // Predicated region
    $region30: #{tpu_custom_call.1} parent=1 // pred_check
      _
    $region31: #{tpu_custom_call.1} parent=1 // pred_check_branch
      %73 = sbr.rel (0) target = $region33
    $region32: #{tpu_custom_call.1} parent=1 // pred_region
      %75 = dma.done [#allocation3], 128
    $region33: #{tpu_custom_call.1} parent=1 // pred_fallthru
      _
    // Predicated region
    $region34: #{tpu_custom_call.1} parent=1 // pred_check
      _
    $region35: #{tpu_custom_call.1} parent=1 // pred_check_branch
      %77 = sbr.rel (0) target = $region37
    $region36: #{tpu_custom_call.1} parent=1 // pred_region
      %79 = dma.done [#allocation6], 2048
    $region37: #{tpu_custom_call.1} parent=1 // pred_fallthru
      _
    // Predicated region
    $region38: #{tpu_custom_call.1} parent=1 // pred_check
      _
    $region39: #{tpu_custom_call.1} parent=1 // pred_check_branch
      %81 = sbr.rel (0) target = $region41
    $region40: #{tpu_custom_call.1} parent=1 // pred_region
      %83 = dma.done [#allocation6], 32
    $region41: #{tpu_custom_call.1} parent=1 // pred_fallthru
      _
    // Predicated region
    $region42: #{tpu_custom_call.1} parent=1 // pred_check
      _
    $region43: #{tpu_custom_call.1} parent=1 // pred_check_branch
      %85 = sbr.rel (0) target = $region45
    $region44: #{tpu_custom_call.1} parent=1 // pred_region
      %87 = dma.done [#allocation9], 2048
    $region45: #{tpu_custom_call.1} parent=1 // pred_fallthru
      _
    %v88 = vld [vmem:[#allocation2] sm:$0xf]
    %v89 = vld [vmem:[#allocation2 + $0x4] sm:$0xf]
    %v90 = vld [vmem:[#allocation5] sm:$0xff]
    %v91 = vld [vmem:[#allocation5 + $0x8] sm:$0xff]
    %v92 = vld [vmem:[#allocation5 + $0x10] sm:$0xff]
    %v93 = vld [vmem:[#allocation5 + $0x18] sm:$0xff]
    %v94 = vld [vmem:[#allocation5 + $0x20] sm:$0xff]
    %v95 = vld [vmem:[#allocation5 + $0x28] sm:$0xff]
    %v96 = vld [vmem:[#allocation5 + $0x30] sm:$0xff]
    %v97 = vld [vmem:[#allocation5 + $0x38] sm:$0xff]
    %v98 = vld [vmem:[#allocation5 + $0x40] sm:$0xff]
    %v99 = vld [vmem:[#allocation5 + $0x48] sm:$0xff]
    %v100 = vld [vmem:[#allocation5 + $0x50] sm:$0xff]
    %v101 = vld [vmem:[#allocation5 + $0x58] sm:$0xff]
    %v102 = vld [vmem:[#allocation5 + $0x60] sm:$0xff]
    %v103 = vld [vmem:[#allocation5 + $0x68] sm:$0xff]
    %v104 = vld [vmem:[#allocation5 + $0x70] sm:$0xff]
    %v105 = vld [vmem:[#allocation5 + $0x78] sm:$0xff]
    %v106 = vld [vmem:[#allocation7] sm:$0x3]
    %v108 = vperm.slane %v106, 0
    %v109 = vperm.slane %v106, 1
    %v114 = vunpack.c.l.b16 %v88
    %v115 = vunpack.c.l.b16 %v89
    %v116 = vpack.c.b16 %v115, %v114
    %v134 = vunpack.c.l.b16 %v90
    %v135 = vunpack.c.h.b16 %v90
    %v136 = vunpack.c.l.b16 %v91
    %v137 = vunpack.c.h.b16 %v91
    %v138 = vunpack.c.l.b16 %v92
    %v139 = vunpack.c.h.b16 %v92
    %v140 = vunpack.c.l.b16 %v93
    %v141 = vunpack.c.h.b16 %v93
    %v142 = vunpack.c.l.b16 %v94
    %v143 = vunpack.c.h.b16 %v94
    %v144 = vunpack.c.l.b16 %v95
    %v145 = vunpack.c.h.b16 %v95
    %v146 = vunpack.c.l.b16 %v96
    %v147 = vunpack.c.h.b16 %v96
    %v148 = vunpack.c.l.b16 %v97
    %v149 = vunpack.c.h.b16 %v97
    %v150 = vunpack.c.l.b16 %v98
    %v151 = vunpack.c.h.b16 %v98
    %v152 = vunpack.c.l.b16 %v99
    %v153 = vunpack.c.h.b16 %v99
    %v154 = vunpack.c.l.b16 %v100
    %v155 = vunpack.c.h.b16 %v100
    %v156 = vunpack.c.l.b16 %v101
    %v157 = vunpack.c.h.b16 %v101
    %v158 = vunpack.c.l.b16 %v102
    %v159 = vunpack.c.h.b16 %v102
    %v160 = vunpack.c.l.b16 %v103
    %v161 = vunpack.c.h.b16 %v103
    %v162 = vunpack.c.l.b16 %v104
    %v163 = vunpack.c.h.b16 %v104
    %v164 = vunpack.c.l.b16 %v105
    %v165 = vunpack.c.h.b16 %v105
    %v166 = vpack.c.b16 %v136, %v134
    %v167 = vpack.c.b16 %v137, %v135
    %v168 = vpack.c.b16 %v140, %v138
    %v169 = vpack.c.b16 %v141, %v139
    %v170 = vpack.c.b16 %v144, %v142
    %v171 = vpack.c.b16 %v145, %v143
    %v172 = vpack.c.b16 %v148, %v146
    %v173 = vpack.c.b16 %v149, %v147
    %v174 = vpack.c.b16 %v152, %v150
    %v175 = vpack.c.b16 %v153, %v151
    %v176 = vpack.c.b16 %v156, %v154
    %v177 = vpack.c.b16 %v157, %v155
    %v178 = vpack.c.b16 %v160, %v158
    %v179 = vpack.c.b16 %v161, %v159
    %v180 = vpack.c.b16 %v164, %v162
    %v181 = vpack.c.b16 %v165, %v163
    %198 = vmatpush.bf16.msra.mxu0 %v180
    %199 = vmatpush.bf16.msra.mxu0 %v178
    %200 = vmatpush.bf16.msra.mxu0 %v176
    %201 = vmatpush.bf16.msra.mxu0 %v174
    %202 = vmatpush.bf16.msra.mxu0 %v172
    %203 = vmatpush.bf16.msra.mxu0 %v170
    %204 = vmatpush.bf16.msra.mxu0 %v168
    %205 = vmatpush.bf16.msra.mxu0 %v166
    %206 = vmatmul.bf16.gmra.mxu0 %v116
    %v207 = vpop.f32.mrf.mxu0
    %v208 = vadd.f32 %v108, %v207
    %v209 = vpop.f32.mrf.mxu0
    %v210 = vadd.f32 %v108, %v209
    %211 = vdwg.mxu0
    %212 = vmatpush.bf16.msra.mxu0 %v181
    %213 = vmatpush.bf16.msra.mxu0 %v179
    %214 = vmatpush.bf16.msra.mxu0 %v177
    %215 = vmatpush.bf16.msra.mxu0 %v175
    %216 = vmatpush.bf16.msra.mxu0 %v173
    %217 = vmatpush.bf16.msra.mxu0 %v171
    %218 = vmatpush.bf16.msra.mxu0 %v169
    %219 = vmatpush.bf16.msra.mxu0 %v167
    %220 = vmatmul.bf16.gmra.mxu0 %v116
    %v221 = vpop.f32.mrf.mxu0
    %v222 = vadd.f32 %v109, %v221
    %v223 = vpop.f32.mrf.mxu0
    %v224 = vadd.f32 %v109, %v223
    %225 = vdwg.mxu0
    %v226 = vmax.f32 %v208, 0.0
    %v227 = vmax.f32 %v222, 0.0
    %v228 = vmax.f32 %v210, 0.0
    %v229 = vmax.f32 %v224, 0.0
    %v230 = vpack.c.bf16 %v228, %v226
    %v231 = vpack.c.bf16 %v229, %v227
    %v232 = vld [vmem:[#allocation8] sm:$0xf]
    %v233 = vld [vmem:[#allocation8 + $0x4] sm:$0xf]
    %v234 = vld [vmem:[#allocation8 + $0x8] sm:$0xf]
    %v235 = vld [vmem:[#allocation8 + $0xc] sm:$0xf]
    %v236 = vld [vmem:[#allocation8 + $0x10] sm:$0xf]
    %v237 = vld [vmem:[#allocation8 + $0x14] sm:$0xf]
    %v238 = vld [vmem:[#allocation8 + $0x18] sm:$0xf]
    %v239 = vld [vmem:[#allocation8 + $0x1c] sm:$0xf]
    %v240 = vld [vmem:[#allocation8 + $0x20] sm:$0xf]
    %v241 = vld [vmem:[#allocation8 + $0x24] sm:$0xf]
    %v242 = vld [vmem:[#allocation8 + $0x28] sm:$0xf]
    %v243 = vld [vmem:[#allocation8 + $0x2c] sm:$0xf]
    %v244 = vld [vmem:[#allocation8 + $0x30] sm:$0xf]
    %v245 = vld [vmem:[#allocation8 + $0x34] sm:$0xf]
    %v246 = vld [vmem:[#allocation8 + $0x38] sm:$0xf]
    %v247 = vld [vmem:[#allocation8 + $0x3c] sm:$0xf]
    %v248 = vld [vmem:[#allocation8 + $0x40] sm:$0xf]
    %v249 = vld [vmem:[#allocation8 + $0x44] sm:$0xf]
    %v250 = vld [vmem:[#allocation8 + $0x48] sm:$0xf]
    %v251 = vld [vmem:[#allocation8 + $0x4c] sm:$0xf]
    %v252 = vld [vmem:[#allocation8 + $0x50] sm:$0xf]
    %v253 = vld [vmem:[#allocation8 + $0x54] sm:$0xf]
    %v254 = vld [vmem:[#allocation8 + $0x58] sm:$0xf]
    %v255 = vld [vmem:[#allocation8 + $0x5c] sm:$0xf]
    %v256 = vld [vmem:[#allocation8 + $0x60] sm:$0xf]
    %v257 = vld [vmem:[#allocation8 + $0x64] sm:$0xf]
    %v258 = vld [vmem:[#allocation8 + $0x68] sm:$0xf]
    %v259 = vld [vmem:[#allocation8 + $0x6c] sm:$0xf]
    %v260 = vld [vmem:[#allocation8 + $0x70] sm:$0xf]
    %v261 = vld [vmem:[#allocation8 + $0x74] sm:$0xf]
    %v262 = vld [vmem:[#allocation8 + $0x78] sm:$0xf]
    %v263 = vld [vmem:[#allocation8 + $0x7c] sm:$0xf]
    %v264 = vld [vmem:[%s4] sm:$0x1]
    %v266 = vperm.slane %v264, 0
    %v300 = vunpack.c.l.b16 %v232
    %v301 = vunpack.c.l.b16 %v233
    %v302 = vunpack.c.l.b16 %v234
    %v303 = vunpack.c.l.b16 %v235
    %v304 = vunpack.c.l.b16 %v236
    %v305 = vunpack.c.l.b16 %v237
    %v306 = vunpack.c.l.b16 %v238
    %v307 = vunpack.c.l.b16 %v239
    %v308 = vunpack.c.l.b16 %v240
    %v309 = vunpack.c.l.b16 %v241
    %v310 = vunpack.c.l.b16 %v242
    %v311 = vunpack.c.l.b16 %v243
    %v312 = vunpack.c.l.b16 %v244
    %v313 = vunpack.c.l.b16 %v245
    %v314 = vunpack.c.l.b16 %v246
    %v315 = vunpack.c.l.b16 %v247
    %v316 = vunpack.c.l.b16 %v248
    %v317 = vunpack.c.l.b16 %v249
    %v318 = vunpack.c.l.b16 %v250
    %v319 = vunpack.c.l.b16 %v251
    %v320 = vunpack.c.l.b16 %v252
    %v321 = vunpack.c.l.b16 %v253
    %v322 = vunpack.c.l.b16 %v254
    %v323 = vunpack.c.l.b16 %v255
    %v324 = vunpack.c.l.b16 %v256
    %v325 = vunpack.c.l.b16 %v257
    %v326 = vunpack.c.l.b16 %v258
    %v327 = vunpack.c.l.b16 %v259
    %v328 = vunpack.c.l.b16 %v260
    %v329 = vunpack.c.l.b16 %v261
    %v330 = vunpack.c.l.b16 %v262
    %v331 = vunpack.c.l.b16 %v263
    %v332 = vpack.c.b16 %v301, %v300
    %v333 = vpack.c.b16 %v303, %v302
    %v334 = vpack.c.b16 %v305, %v304
    %v335 = vpack.c.b16 %v307, %v306
    %v336 = vpack.c.b16 %v309, %v308
    %v337 = vpack.c.b16 %v311, %v310
    %v338 = vpack.c.b16 %v313, %v312
    %v339 = vpack.c.b16 %v315, %v314
    %v340 = vpack.c.b16 %v317, %v316
    %v341 = vpack.c.b16 %v319, %v318
    %v342 = vpack.c.b16 %v321, %v320
    %v343 = vpack.c.b16 %v323, %v322
    %v344 = vpack.c.b16 %v325, %v324
    %v345 = vpack.c.b16 %v327, %v326
    %v346 = vpack.c.b16 %v329, %v328
    %v347 = vpack.c.b16 %v331, %v330
    %364 = vmatpush.bf16.msra.mxu0 %v339
    %365 = vmatpush.bf16.msra.mxu0 %v338
    %366 = vmatpush.bf16.msra.mxu0 %v337
    %367 = vmatpush.bf16.msra.mxu0 %v336
    %368 = vmatpush.bf16.msra.mxu0 %v335
    %369 = vmatpush.bf16.msra.mxu0 %v334
    %370 = vmatpush.bf16.msra.mxu0 %v333
    %371 = vmatpush.bf16.msra.mxu0 %v332
    %372 = vmatmul.bf16.gmra.mxu0 %v230
    %v373 = vpop.f32.mrf.mxu0
    %v374 = vadd.f32 %v266, %v373
    %v375 = vpop.f32.mrf.mxu0
    %v376 = vadd.f32 %v266, %v375
    %377 = vdwg.mxu0
    %378 = vmatpush.bf16.msra.mxu0 %v347
    %379 = vmatpush.bf16.msra.mxu0 %v346
    %380 = vmatpush.bf16.msra.mxu0 %v345
    %381 = vmatpush.bf16.msra.mxu0 %v344
    %382 = vmatpush.bf16.msra.mxu0 %v343
    %383 = vmatpush.bf16.msra.mxu0 %v342
    %384 = vmatpush.bf16.msra.mxu0 %v341
    %385 = vmatpush.bf16.msra.mxu0 %v340
    %386 = vmatmul.bf16.gmra.mxu0 %v231
    %v387 = vpop.f32.mrf.mxu0
    %v388 = vadd.f32 %v374, %v387
    %v389 = vpop.f32.mrf.mxu0
    %v390 = vadd.f32 %v376, %v389
    %391 = vdwg.mxu0
    %v392 = vunpack.c.l.bf16 %v88
    %v393 = vunpack.c.l.bf16 %v89
    %v394 = vadd.f32 %v388, %v392
    %v395 = vadd.f32 %v390, %v393
    %396 = vadd.xlane.f32.xlu0 %v394
    %v397 = vpop.xlane.xlu0 %396
    %398 = vadd.xlane.f32.xlu0 %v395
    %v399 = vpop.xlane.xlu0 %398
    %v400 = vrcp.pop 128.0
    %v401 = vmul.f32 128.0, %v400
    %v402 = vsub.f32 1.0, %v401
    %v403 = vmul.f32 %v400, %v402
    %v404 = vadd.f32 %v400, %v403
    %vm405 = vweird.f32 %v400
    %v406 = vsel %vm405, %v400, %v404
    %v407 = vmul.f32 %v397, %v406
    %v408 = vmul.f32 %v399, %v406
    %v409 = vsub.f32 %v394, %v407
    %v410 = vsub.f32 %v395, %v408
    %v411 = vmul.f32 %v409, %v409
    %v412 = vmul.f32 %v410, %v410
    %413 = vadd.xlane.f32.xlu0 %v411
    %v414 = vpop.xlane.xlu0 %413
    %415 = vadd.xlane.f32.xlu0 %v412
    %v416 = vpop.xlane.xlu0 %415
    %v417 = vmul.f32 %v414, %v406
    %v418 = vmul.f32 %v416, %v406
    %v419 = vadd.f32 %v417, 1e-05
    %v420 = vadd.f32 %v418, 1e-05
    %v421 = vrsqrt.pop %v419
    %v422 = vmul.f32 %v421, %v419
    %v423 = vmul.f32 %v422, %v421
    %v424 = vmul.f32 0.5, %v423
    %v425 = vsub.f32 1.5, %v424
    %v426 = vmul.f32 %v421, %v425
    %vm427 = vweird.f32 %v419
    %vm428 = vweird.f32 %v421
    %vm429 = vmor %vm427, %vm428
    %v430 = vsel %vm429, %v421, %v426
    %v431 = vrsqrt.pop %v420
    %v432 = vmul.f32 %v431, %v420
    %v433 = vmul.f32 %v432, %v431
    %v434 = vmul.f32 0.5, %v433
    %v435 = vsub.f32 1.5, %v434
    %v436 = vmul.f32 %v431, %v435
    %vm437 = vweird.f32 %v420
    %vm438 = vweird.f32 %v431
    %vm439 = vmor %vm437, %vm438
    %v440 = vsel %vm439, %v431, %v436
    %v441 = vmul.f32 %v409, %v430
    %v442 = vmul.f32 %v410, %v440
    %v443 = vld [vmem:[%s5] sm:$0x1]
    %v445 = vperm.slane %v443, 0
    %v447 = vmul.f32 %v441, %v445
    %v448 = vmul.f32 %v442, %v445
    %v449 = vld [vmem:[%s6] sm:$0x1]
    %v451 = vperm.slane %v449, 0
    %v453 = vadd.f32 %v447, %v451
    %v454 = vadd.f32 %v448, %v451
    %v455 = vpack.c.bf16 %v453, %v453
    %v456 = vpack.c.bf16 %v454, %v454
    %457 = vst [vmem:[#allocation10] sm:$0xf] %v455
    %458 = vst [vmem:[#allocation10 + $0x4] sm:$0xf] %v456
    // Predicated region
    $region46: #{tpu_custom_call.1} parent=1 // pred_check
      _
    $region47: #{tpu_custom_call.1} parent=1 // pred_check_branch
      %460 = sbr.rel (0) target = $region49
    $region48: #{tpu_custom_call.1} parent=1 // pred_region
      %462 = vsyncadd [#allocation4], 0
      %s463 = sshll.u32 [#allocation10], 4
      %s464 = int_to_ptr.vmem [resolvable:$true] %s463
      %s465 = sshll.u32 %s7, 4
      %s466 = int_to_ptr.hbm [resolvable:$true] %s465
      %471 = dma.vmem_to_hbm [thread:$0]  %s464, 128, %s466, [#allocation4], 64, 64, 4
    $region49: #{tpu_custom_call.1} parent=1 // pred_fallthru
      _
    // Predicated region
    $region50: #{tpu_custom_call.1} parent=1 // pred_check
      _
    $region51: #{tpu_custom_call.1} parent=1 // pred_check_branch
      %473 = sbr.rel (0) target = $region53
    $region52: #{tpu_custom_call.1} parent=1 // pred_region
      %475 = dma.done [#allocation4], 128
    $region53: #{tpu_custom_call.1} parent=1 // pred_fallthru
      _
    %476 = vsyncpa [#allocation3], 1
    %477 = vsyncpa [#allocation6], 1
    %478 = vsyncpa [#allocation9], 1
    %479 = vsyncpa [#allocation4], 1

</llo_original>
